<compile_context>
chip_gen: v7x
topology: tpu7x:2x2x1
jax: 0.10.0
libtpu: 0.0.40
codegen_flags: <defaults>
</compile_context>

<pallas_src>
import jax
import jax.numpy as jnp
from jax import lax
from jax.experimental import pallas as pl
from jax.experimental.pallas import tpu as pltpu


# Contract the shared K axis of both operands directly (no transpose), batch dim 0.
_NT_DIMS = (((2,), (2,)), ((0,), (0,)))


def _bmm_nt_single_k_kernel(x1_ref, x2_ref, o_ref):
    """Whole K in one tile: no accumulator, no pl.when branches."""
    o_ref[...] = lax.dot_general(
        x1_ref[...], x2_ref[...],
        dimension_numbers=_NT_DIMS,
        preferred_element_type=jnp.float32,
    ).astype(o_ref.dtype)


def _bmm_nt_acc_in_out_kernel(x1_ref, x2_ref, o_ref):
    """K tiled, f32 output: accumulate straight into the resident output block."""
    k_id = pl.program_id(3)

    @pl.when(k_id == 0)
    def _():
        o_ref[...] = jnp.zeros_like(o_ref)

    o_ref[...] += lax.dot_general(
        x1_ref[...], x2_ref[...],
        dimension_numbers=_NT_DIMS,
        preferred_element_type=jnp.float32,
    )


def _bmm_nt_acc_scratch_kernel(x1_ref, x2_ref, o_ref, acc_ref):
    """K tiled, sub-f32 output: f32 scratch accumulator with init/finalize."""
    k_id = pl.program_id(3)

    @pl.when(k_id == 0)
    def _():
        acc_ref[...] = jnp.zeros_like(acc_ref)

    acc_ref[...] += lax.dot_general(
        x1_ref[...], x2_ref[...],
        dimension_numbers=_NT_DIMS,
        preferred_element_type=jnp.float32,
    )

    @pl.when(k_id == pl.num_programs(3) - 1)
    def _():
        o_ref[...] = acc_ref[...].astype(o_ref.dtype)


def _pick_tile(dim: int, target: int):
    """Return (tile, padded_dim).

    Largest 128-aligned divisor of `dim` that is <= target; if none exists,
    clamp the tile to `target` and zero-pad `dim` up to a multiple of it
    (instead of a full-extent tile that can exceed VMEM on large ragged dims,
    worst on v7x's 64 MiB)."""
    if dim <= target:
        return dim, dim
    t = (target // 128) * 128
    cand = t
    while cand >= 128:
        if dim % cand == 0:
            return cand, dim
        cand -= 128
    padded = ((dim + t - 1) // t) * t
    return t, padded


def _pick_batch_tile(B: int, per_batch_elems: int, target_elems: int = 1 << 16) -> int:
    """Pack batches per grid step when per-batch tiles are tiny, but keep at
    least two parallel grid steps when B >= 2 (v7x has 2 TCs/chip)."""
    cap = max(1, target_elems // max(1, per_batch_elems))
    bt = max(1, min(B, cap))
    if B >= 2:
        bt = min(bt, B // 2)
    bt = max(1, bt)
    while B % bt != 0:
        bt -= 1
    return bt


def bmm_transposed(x1: jax.Array, x2: jax.Array, *, compute_dtype=None) -> jax.Array:
    """x1: (B, M, K), x2: (B, N, K) -> (B, M, N) == matmul(x1, x2.transpose(0, 2, 1))."""
    B, M, K = x1.shape
    B2, N, K2 = x2.shape
    assert B == B2 and K == K2, "shape mismatch"
    out_dtype = x1.dtype

    # Optional bf16 compute path for bf16-native MXUs (v6e/v7x); f32 accumulation kept.
    if compute_dtype is not None:
        x1 = x1.astype(compute_dtype)
        x2 = x2.astype(compute_dtype)

    # HBM-traffic-friendly tiles; full extents when a dim is small.
    tm, Mp = _pick_tile(M, 512)
    tn, Np = _pick_tile(N, 512)
    tk, Kp = _pick_tile(K, 1024)

    # Zero-pad ragged dims up to the tile (zeros along K contribute nothing; the
    # extra M/N rows/cols are sliced off the output afterwards).
    if (Mp, Kp) != (M, K):
        x1 = jnp.pad(x1, ((0, 0), (0, Mp - M), (0, Kp - K)))
    if (Np, Kp) != (N, K):
        x2 = jnp.pad(x2, ((0, 0), (0, Np - N), (0, Kp - K)))

    # Pack several batches per step only when each batch fits a single tile
    # (amortizes the ~0.35 us per-step overhead on tiny shapes).
    if tm == Mp and tn == Np and tk == Kp:
        bt = _pick_batch_tile(B, Mp * Kp + Np * Kp + Mp * Np)
    else:
        bt = 1

    grid = (B // bt, Mp // tm, Np // tn, Kp // tk)
    k_steps = grid[3]

    # Pick the cheapest kernel: skip the accumulator whenever it is redundant.
    if k_steps == 1:
        kernel = _bmm_nt_single_k_kernel
        scratch_shapes = []
    elif jnp.dtype(out_dtype) == jnp.float32:
        kernel = _bmm_nt_acc_in_out_kernel
        scratch_shapes = []
    else:
        kernel = _bmm_nt_acc_scratch_kernel
        scratch_shapes = [pltpu.VMEM((bt, tm, tn), jnp.float32)]

    in_itemsize = jnp.dtype(x1.dtype).itemsize
    out_itemsize = jnp.dtype(out_dtype).itemsize

    # Advisory cost; bytes_accessed includes the tile re-fetch factor of each operand.
    cost = pl.CostEstimate(
        flops=2 * B * Mp * Np * Kp,
        transcendentals=0,
        bytes_accessed=(
            in_itemsize * (B * Mp * Kp * (Np // tn) + B * Np * Kp * (Mp // tm))
            + out_itemsize * B * Mp * Np
        ),
    )

    # Explicit scoped-VMEM limit: double-buffered inputs/output (+ scratch) with 2x
    # headroom, clamped to a value safe on every chip (v5e default scoped ~16 MiB,
    # v7x physical 64 MiB).
    need = (
        2 * (bt * tm * tk + bt * tn * tk) * in_itemsize
        + 2 * bt * tm * tn * out_itemsize
        + (bt * tm * tn * 4 if scratch_shapes else 0)
    )
    vmem_limit = int(min(max(32 << 20, 2 * need), 56 << 20))

    grid_spec = pltpu.PrefetchScalarGridSpec(
        num_scalar_prefetch=0,
        grid=grid,
        in_specs=[
            pl.BlockSpec((bt, tm, tk), lambda b, i, j, k: (b, i, k)),
            pl.BlockSpec((bt, tn, tk), lambda b, i, j, k: (b, j, k)),
        ],
        out_specs=pl.BlockSpec((bt, tm, tn), lambda b, i, j, k: (b, i, j)),
        scratch_shapes=scratch_shapes,
    )

    out = pl.pallas_call(
        kernel,
        out_shape=jax.ShapeDtypeStruct((B, Mp, Np), out_dtype),
        grid_spec=grid_spec,
        compiler_params=pltpu.CompilerParams(
            dimension_semantics=("parallel", "parallel", "parallel", "arbitrary"),
            vmem_limit_bytes=vmem_limit,
        ),
        cost_estimate=cost,
    )(x1, x2)

    if (Mp, Np) != (M, N):
        out = out[:, :M, :N]
    return out


class Model:
    """JAX/Pallas port of the PyTorch Model."""

    def __init__(self):
        # Same parameter as the PyTorch module (unused in forward, kept for fidelity).
        self.bias = jnp.array([1.0], dtype=jnp.float32)

    def __call__(self, x1, x2):
        # x3 = torch.bmm(x1, x2.permute(0, 2, 1))  <- dead: overwritten below, elided.
        return bmm_transposed(x1, x2)  # torch.matmul(x1, x2.permute(0, 2, 1))


if __name__ == "__main__":
    key = jax.random.PRNGKey(0)
    k1, k2 = jax.random.split(key)

    # Small shapes consistent with the module's batched 3-D inputs.
    B, M, N, K = 2, 8, 8, 32
    x1 = jax.random.normal(k1, (B, M, K), dtype=jnp.float32)
    x2 = jax.random.normal(k2, (B, N, K), dtype=jnp.float32)

    model = Model()
    out = jax.block_until_ready(model(x1, x2))

    # Reference check against plain JAX (matmul with x2 transposed on last 2 dims).
    ref = jnp.matmul(x1, jnp.transpose(x2, (0, 2, 1)))
    assert out.shape == (B, M, N)
    assert jnp.allclose(out, ref, atol=1e-5, rtol=1e-5)

    print("KERNEL_OK")
</pallas_src>

<mosaic_0001>
module attributes {stable_mosaic.version = 11 : i64} {
  func.func @_bmm_nt_single_k_kernel(%arg0: i32, %arg1: i32, %arg2: i32, %arg3: i32, %arg4: memref<1x8x32xf32, #tpu.memory_space<vmem>>, %arg5: memref<1x8x32xf32, #tpu.memory_space<vmem>>, %arg6: memref<1x8x8xf32, #tpu.memory_space<vmem>>) attributes {dimension_semantics = [#tpu.dimension_semantics<parallel>, #tpu.dimension_semantics<parallel>, #tpu.dimension_semantics<parallel>, #tpu.dimension_semantics<arbitrary>], iteration_bounds = array<i64: 2, 1, 1, 1>, scalar_prefetch = 0 : i64, scratch_operands = 0 : i64, tpu.core_type = #tpu.core_type<tc>, window_params = [{transform_indices = @transform_0, window_bounds = array<i64: 1, 8, 32>}, {transform_indices = @transform_1, window_bounds = array<i64: 1, 8, 32>}, {transform_indices = @transform_2, window_bounds = array<i64: 1, 8, 8>}]} {
    %c0 = arith.constant 0 : index
    %c0_0 = arith.constant 0 : index
    %c0_1 = arith.constant 0 : index
    %0 = vector.load %arg4[%c0, %c0_0, %c0_1] : memref<1x8x32xf32, #tpu.memory_space<vmem>>, vector<1x8x32xf32>
    %c0_2 = arith.constant 0 : index
    %c0_3 = arith.constant 0 : index
    %c0_4 = arith.constant 0 : index
    %1 = vector.load %arg5[%c0_2, %c0_3, %c0_4] : memref<1x8x32xf32, #tpu.memory_space<vmem>>, vector<1x8x32xf32>
    %cst = arith.constant dense<0.000000e+00> : vector<1x8x8xf32>
    %2 = tpu.matmul %0, %1, %cst {dimension_numbers = #tpu.dot_dimension_numbers<[2], [2], [1], [1], [0, 0, 0, 1, 1, 1], [0], [0]>} : vector<1x8x32xf32>, vector<1x8x32xf32>, vector<1x8x8xf32> -> vector<1x8x8xf32>
    %c0_5 = arith.constant 0 : index
    %c0_6 = arith.constant 0 : index
    %c0_7 = arith.constant 0 : index
    %3 = vector.load %arg6[%c0_5, %c0_6, %c0_7] : memref<1x8x8xf32, #tpu.memory_space<vmem>>, vector<1x8x8xf32>
    tpu.vector_store %arg6[%c0_5, %c0_6, %c0_7], %2 {strides = array<i32>} : memref<1x8x8xf32, #tpu.memory_space<vmem>>, vector<1x8x8xf32>,
    return
  }
  func.func @transform_0(%arg0: i32, %arg1: i32, %arg2: i32, %arg3: i32) -> (i32, i32, i32) {
    %c0_i32 = arith.constant 0 : i32
    return %arg0, %arg1, %arg3 : i32, i32, i32
  }
  func.func @transform_1(%arg0: i32, %arg1: i32, %arg2: i32, %arg3: i32) -> (i32, i32, i32) {
    %c0_i32 = arith.constant 0 : i32
    return %arg0, %arg2, %arg3 : i32, i32, i32
  }
  func.func @transform_2(%arg0: i32, %arg1: i32, %arg2: i32, %arg3: i32) -> (i32, i32, i32) {
    %c0_i32 = arith.constant 0 : i32
    return %arg0, %arg1, %arg2 : i32, i32, i32
  }
}

</mosaic_0001>

<llo_original>
// kernel: tpu_custom_call.1
$region0: #{tpu_custom_call.1}
  #allocation0 [shape = 'u32[]', space=smem, size = 0x4, offset = 0x4, fixed_abs, tag = 'smem constant byte address 0x4 - core index']
  #allocation1 [shape = 'u32[144,128]{1,0:T(1,128)}', space=vmem, size = 0x12000, scoped, tag = 'internal scratch']
  %s0 = inlined_call_operand.hbm [shape: f32[2,8,32], index: 0, kind: input, shape index: {}]
  %s1 = inlined_call_operand.hbm [shape: f32[2,8,32], index: 1, kind: input, shape index: {}]
  %s2 = inlined_call_operand.hbm [shape: f32[2,8,8], index: 2, kind: output, shape index: {}]
  %s3 = sld [smem:[#allocation0]]
  $region49: #{tpu_custom_call.1} parent=0
    _
  %s5 = ssub.s32 1, %s3
  %s6 = scalar_select 0, %s5, %s3
  $region1: #{tpu_custom_call.1} parent=0
    #allocation2 [shape = 'u8[8192]{0}', space=vmem, size = 0x2000, scoped, tag = 'input window, operand 0']
    #allocation3 [shape = 's32[2]{0}', space=sflag, size = 0x8, scoped, tag = 'scoped memory for tpu_custom_call.1']
    #allocation4 [shape = 's32[2]{0}', space=sflag, size = 0x8, scoped, tag = 'scoped memory for tpu_custom_call.1']
    #allocation5 [shape = 'u8[8192]{0}', space=vmem, size = 0x2000, scoped, tag = 'input window, operand 1']
    #allocation6 [shape = 's32[2]{0}', space=sflag, size = 0x8, scoped, tag = 'scoped memory for tpu_custom_call.1']
    #allocation7 [shape = 'u8[8192]{0}', space=vmem, size = 0x2000, scoped, tag = 'output window, operand 0']
    %7 = vsyncpa [#allocation3], 0
    %s8 = scalar_lea.sflag [#allocation3], 1
    %9 = vsyncpa %s8, 0
    %10 = vsyncpa [#allocation6], 0
    %s11 = scalar_lea.sflag [#allocation6], 1
    %12 = vsyncpa %s11, 0
    %13 = vsyncpa [#allocation4], 0
    %s14 = scalar_lea.sflag [#allocation4], 1
    %15 = vsyncpa %s14, 0
    loop: start=0, step=1, limit=4
    $region2: #{tpu_custom_call.1} parent=1 // loop_pre_header
      _
    $region3: #{tpu_custom_call.1} parent=1 // loop_header
      %s17 = sphi 0, %s21
      %p18 = scmp.ge.s32.totalorder %s17, 4
      %s24 = sphi 0, %s50
      %s25 = sphi 0, %s46
      %s26 = sphi 0, %s42
      %s27 = sphi 0, %s38
      %s28 = sphi 0, %s24
      %s29 = sphi 0, %s25
      %s30 = sphi 0, %s26
      %s31 = sphi 0, %s27
      %s32 = sphi 0, %s28
      %s33 = sphi 0, %s29
      %s34 = sphi 0, %s30
      %s35 = sphi 0, %s31
      %s57 = sphi 0, %s59
      %s60 = sphi 0, %s57
      %s61 = sphi 0, %s60
      %s77 = sphi 0, %s61
      %s87 = sphi 0, %s89
      %s90 = sphi 0, %s87
      %s91 = sphi 0, %s90
      %s107 = sphi 0, %s91
      %s117 = sphi 0, %s119
      %s120 = sphi 0, %s117
      %s121 = sphi 0, %s120
      %s137 = sphi 0, %s121
    $region4: #{tpu_custom_call.1} parent=1 // loop_header_branch
      %20 = sbr.rel (%p18) target = $region8
    $region5: #{tpu_custom_call.1} parent=1 // loop_body
      %s22 = ssub.s32 %s17, 1
      %s23 = ssub.s32 %s17, 2
      %s36 = sadd.s32 1, %s27
      %p37 = scmp.ge.s32.totalorder %s36, 1
      %s38 = scalar_select %p37, 0, %s36
      %s39 = sadd.s32 1, %s26
      %s40 = scalar_select %p37, %s39, %s26
      %p41 = scmp.ge.s32.totalorder %s40, 1
      %s42 = scalar_select %p41, 0, %s40
      %s43 = sadd.s32 1, %s25
      %s44 = scalar_select %p41, %s43, %s25
      %p45 = scmp.ge.s32.totalorder %s44, 1
      %s46 = scalar_select %p45, 0, %s44
      %s47 = sadd.s32 1, %s24
      %s48 = scalar_select %p45, %s47, %s24
      %p49 = scmp.ge.s32.totalorder %s48, 2
      %s50 = scalar_select %p49, 0, %s48
      %s51 = ssub.s32 %s24, %s50
      %s52 = ssub.s32 %s25, %s46
      %s53 = sor.u32 %s51, %s52
      %s54 = ssub.s32 %s27, %s38
      %s55 = sor.u32 %s53, %s54
      %p56 = scmp.eq.s32.totalorder %s55, 0
      %s58 = sadd.s32 %s57, 1
      %s59 = scalar_select %p56, %s57, %s58
      %p62 = pneg %p56
      %p63 = scmp.eq.s32.totalorder %s17, 1
      %p64 = por %p62, %p63
      %p65 = scmp.ne.s32.totalorder %s57, %s60
      %p66 = scmp.eq.s32.totalorder %s17, 0
      %p67 = por %p65, %p66
      %p68 = scmp.ne.s32.totalorder %s57, %s60
      %p69 = scmp.eq.s32.totalorder %s22, 1
      %p70 = por %p68, %p69
      %p71 = scmp.ne.s32.totalorder %s60, %s61
      %p72 = scmp.eq.s32.totalorder %s22, 0
      %p73 = por %p71, %p72
      %p74 = scmp.ne.s32.totalorder %s60, %s61
      %p75 = scmp.eq.s32.totalorder %s23, 1
      %p76 = por %p74, %p75
      %p78 = scmp.ne.s32.totalorder %s61, %s77
      %p79 = scmp.eq.s32.totalorder %s23, 0
      %p80 = por %p78, %p79
      %s81 = ssub.s32 %s24, %s50
      %s82 = ssub.s32 %s26, %s42
      %s83 = sor.u32 %s81, %s82
      %s84 = ssub.s32 %s27, %s38
      %s85 = sor.u32 %s83, %s84
      %p86 = scmp.eq.s32.totalorder %s85, 0
      %s88 = sadd.s32 %s87, 1
      %s89 = scalar_select %p86, %s87, %s88
      %p92 = pneg %p86
      %p93 = scmp.eq.s32.totalorder %s17, 1
      %p94 = por %p92, %p93
      %p95 = scmp.ne.s32.totalorder %s87, %s90
      %p96 = scmp.eq.s32.totalorder %s17, 0
      %p97 = por %p95, %p96
      %p98 = scmp.ne.s32.totalorder %s87, %s90
      %p99 = scmp.eq.s32.totalorder %s22, 1
      %p100 = por %p98, %p99
      %p101 = scmp.ne.s32.totalorder %s90, %s91
      %p102 = scmp.eq.s32.totalorder %s22, 0
      %p103 = por %p101, %p102
      %p104 = scmp.ne.s32.totalorder %s90, %s91
      %p105 = scmp.eq.s32.totalorder %s23, 1
      %p106 = por %p104, %p105
      %p108 = scmp.ne.s32.totalorder %s91, %s107
      %p109 = scmp.eq.s32.totalorder %s23, 0
      %p110 = por %p108, %p109
      %s111 = ssub.s32 %s24, %s50
      %s112 = ssub.s32 %s25, %s46
      %s113 = sor.u32 %s111, %s112
      %s114 = ssub.s32 %s26, %s42
      %s115 = sor.u32 %s113, %s114
      %p116 = scmp.eq.s32.totalorder %s115, 0
      %s118 = sadd.s32 %s117, 1
      %s119 = scalar_select %p116, %s117, %s118
      %p122 = pneg %p116
      %p123 = scmp.eq.s32.totalorder %s17, 1
      %p124 = por %p122, %p123
      %p125 = scmp.ne.s32.totalorder %s117, %s120
      %p126 = scmp.eq.s32.totalorder %s17, 0
      %p127 = por %p125, %p126
      %p128 = scmp.ne.s32.totalorder %s117, %s120
      %p129 = scmp.eq.s32.totalorder %s22, 1
      %p130 = por %p128, %p129
      %p131 = scmp.ne.s32.totalorder %s120, %s121
      %p132 = scmp.eq.s32.totalorder %s22, 0
      %p133 = por %p131, %p132
      %p134 = scmp.ne.s32.totalorder %s120, %s121
      %p135 = scmp.eq.s32.totalorder %s23, 1
      %p136 = por %p134, %p135
      %p138 = scmp.ne.s32.totalorder %s121, %s137
      %p139 = scmp.eq.s32.totalorder %s23, 0
      %p140 = por %p138, %p139
      %p141 = scmp.le.s32.totalorder 1, %s17
      %p142 = scmp.lt.s32.totalorder %s17, 3
      %p143 = pnand %p141, %p142
      %p144 = pneg %p143
      // Predicated region
      $region9: #{tpu_custom_call.1} parent=5 // pred_check
        _
      $region10: #{tpu_custom_call.1} parent=5 // pred_check_branch
        %146 = sbr.rel (%p143) target = $region12
      $region11: #{tpu_custom_call.1} parent=5 // pred_region
        %s147 = ssub.s32 %s17, 1
      $region12: #{tpu_custom_call.1} parent=5 // pred_fallthru
        _
      %p148 = scmp.lt.s32.totalorder %s17, 2
      // Predicated region
      $region13: #{tpu_custom_call.1} parent=5 // pred_check
        %p149 = pneg %p148
      $region14: #{tpu_custom_call.1} parent=5 // pred_check_branch
        %151 = sbr.rel (%p149) target = $region16
      $region15: #{tpu_custom_call.1} parent=5 // pred_region
        // Predicated region
        $region17: #{tpu_custom_call.1} parent=15 // pred_check
          %p152 = pneg %p67
        $region18: #{tpu_custom_call.1} parent=15 // pred_check_branch
          %154 = sbr.rel (%p152) target = $region20
        $region19: #{tpu_custom_call.1} parent=15 // pred_region
          %s155 = sand.u32 %s57, 1
          %s156 = scalar_lea.sflag [#allocation3], %s155
          %s157 = sand.u32 %s57, 1
          %s158 = smul.addr %s157, 8
          %s159 = scalar_lea.vmem [#allocation2], %s158
          %s161 = ssub.s32 128, 128
          %162 = vsyncadd %s156, %s161
          %s163 = sadd.s32 %s27, %s25
          %s164 = sadd.s32 %s163, %s24
          %s165 = smul.addr %s164, 128
          %s166 = scalar_lea.hbm %s0, %s165
          %s168 = sshll.u32 %s159, 4
          %s169 = int_to_ptr.vmem [resolvable:$true] %s168
          %171 = dma.hbm_to_vmem [thread:$0]  %s166, 128, %s169, %s156
        $region20: #{tpu_custom_call.1} parent=15 // pred_fallthru
          _
        // Predicated region
        $region21: #{tpu_custom_call.1} parent=15 // pred_check
          %p172 = pneg %p97
        $region22: #{tpu_custom_call.1} parent=15 // pred_check_branch
          %174 = sbr.rel (%p172) target = $region24
        $region23: #{tpu_custom_call.1} parent=15 // pred_region
          %s175 = sand.u32 %s87, 1
          %s176 = scalar_lea.sflag [#allocation6], %s175
          %s177 = sand.u32 %s87, 1
          %s178 = smul.addr %s177, 8
          %s179 = scalar_lea.vmem [#allocation5], %s178
          %s181 = ssub.s32 128, 128
          %182 = vsyncadd %s176, %s181
          %s183 = sadd.s32 %s27, %s26
          %s184 = sadd.s32 %s183, %s24
          %s185 = smul.addr %s184, 128
          %s186 = scalar_lea.hbm %s1, %s185
          %s188 = sshll.u32 %s179, 4
          %s189 = int_to_ptr.vmem [resolvable:$true] %s188
          %191 = dma.hbm_to_vmem [thread:$0]  %s186, 128, %s189, %s176
        $region24: #{tpu_custom_call.1} parent=15 // pred_fallthru
          _
      $region16: #{tpu_custom_call.1} parent=5 // pred_fallthru
        _
      %p192 = scmp.le.s32.totalorder 1, %s17
      %p193 = scmp.lt.s32.totalorder %s17, 3
      %p194 = pnand %p192, %p193
      %p195 = pneg %p194
      // Predicated region
      $region25: #{tpu_custom_call.1} parent=5 // pred_check
        _
      $region26: #{tpu_custom_call.1} parent=5 // pred_check_branch
        %197 = sbr.rel (%p194) target = $region28
      $region27: #{tpu_custom_call.1} parent=5 // pred_region
        %s198 = ssub.s32 %s17, 1
        %s199 = sand.u32 %s60, 1
        %s200 = scalar_lea.sflag [#allocation3], %s199
        %s201 = sand.u32 %s60, 1
        %s202 = smul.addr %s201, 8
        %s203 = scalar_lea.vmem [#allocation2], %s202
        // Predicated region
        $region29: #{tpu_custom_call.1} parent=27 // pred_check
          %p204 = pneg %p73
        $region30: #{tpu_custom_call.1} parent=27 // pred_check_branch
          %206 = sbr.rel (%p204) target = $region32
        $region31: #{tpu_custom_call.1} parent=27 // pred_region
          %207 = dma.done %s200, 128
        $region32: #{tpu_custom_call.1} parent=27 // pred_fallthru
          _
        %s208 = sand.u32 %s90, 1
        %s209 = scalar_lea.sflag [#allocation6], %s208
        %s210 = sand.u32 %s90, 1
        %s211 = smul.addr %s210, 8
        %s212 = scalar_lea.vmem [#allocation5], %s211
        // Predicated region
        $region33: #{tpu_custom_call.1} parent=27 // pred_check
          %p213 = pneg %p103
        $region34: #{tpu_custom_call.1} parent=27 // pred_check_branch
          %215 = sbr.rel (%p213) target = $region36
        $region35: #{tpu_custom_call.1} parent=27 // pred_region
          %216 = dma.done %s209, 128
        $region36: #{tpu_custom_call.1} parent=27 // pred_fallthru
          _
        %s217 = sand.u32 %s60, 1
        %s218 = scalar_lea.sflag [#allocation3], %s217
        %s219 = sand.u32 %s60, 1
        %s220 = smul.addr %s219, 8
        %s221 = scalar_lea.vmem [#allocation2], %s220
        %p222 = pneg %p73
        %p223 = pneg %p70
        %s224 = sand.u32 %s90, 1
        %s225 = scalar_lea.sflag [#allocation6], %s224
        %s226 = sand.u32 %s90, 1
        %s227 = smul.addr %s226, 8
        %s228 = scalar_lea.vmem [#allocation5], %s227
        %p229 = pneg %p103
        %p230 = pneg %p100
        %p231 = pneg %p133
        %p232 = pneg %p130
        %s233 = sand.u32 %s120, 1
        %s234 = scalar_lea.sflag [#allocation4], %s233
        %s235 = sand.u32 %s120, 1
        %s236 = smul.addr %s235, 8
        %s237 = scalar_lea.vmem [#allocation7], %s236
        %v238 = vld [vmem:[%s203] sm:$0xff]
        %v239 = vld [vmem:[%s212] sm:$0xff]
        %vm240 = vcmask 261120
        %v242 = vsel %vm240, %v238, 0
        %v245 = vsel %vm240, %v239, 0
        %247 = vmatprep.subr.mxu0 0.0
        %248 = vmatpush1.xpose.msra.mxu0 %v245
        %249 = vmatprep.subr.mxu0 0.0
        %250 = vmatpush1.xpose.msra.mxu0 0.0
        %251 = vmatprep.subr.mxu0 0.0
        %252 = vmatpush1.xpose.msra.mxu0 0.0
        %253 = vmatprep.subr.mxu0 0.0
        %254 = vmatpush1.xpose.msra.mxu0 0.0
        %255 = vmatprep.subr.mxu0 0.0
        %256 = vmatpush1.xpose.msra.mxu0 0.0
        %257 = vmatprep.subr.mxu0 0.0
        %258 = vmatpush1.xpose.msra.mxu0 0.0
        %259 = vmatprep.subr.mxu0 0.0
        %260 = vmatpush1.xpose.msra.mxu0 0.0
        %261 = vmatprep.subr.mxu0 0.0
        %262 = vmatpush1.xpose.msra.mxu0 0.0
        %263 = vmatprep.subr.mxu0 0.0
        %264 = vmatpush1.xpose.msra.mxu0 0.0
        %265 = vmatprep.subr.mxu0 0.0
        %266 = vmatpush1.xpose.msra.mxu0 0.0
        %267 = vmatprep.subr.mxu0 0.0
        %268 = vmatpush1.xpose.msra.mxu0 0.0
        %269 = vmatprep.subr.mxu0 0.0
        %270 = vmatpush1.xpose.msra.mxu0 0.0
        %271 = vmatprep.subr.mxu0 0.0
        %272 = vmatpush1.xpose.msra.mxu0 0.0
        %273 = vmatprep.subr.mxu0 0.0
        %274 = vmatpush1.xpose.msra.mxu0 0.0
        %275 = vmatprep.subr.mxu0 0.0
        %276 = vmatpush1.xpose.msra.mxu0 0.0
        %277 = vmatprep.subr.mxu0 0.0
        %278 = vmatpush1.xpose.msra.mxu0 0.0
        %279 = vmatprep.subr.mxu0 0.0
        %280 = vmatpush1.xpose.msra.mxu0 0.0
        %281 = vmatprep.subr.mxu0 0.0
        %282 = vmatpush1.xpose.msra.mxu0 0.0
        %283 = vmatprep.subr.mxu0 0.0
        %284 = vmatpush1.xpose.msra.mxu0 0.0
        %285 = vmatprep.subr.mxu0 0.0
        %286 = vmatpush1.xpose.msra.mxu0 0.0
        %287 = vmatprep.subr.mxu0 0.0
        %288 = vmatpush1.xpose.msra.mxu0 0.0
        %289 = vmatprep.subr.mxu0 0.0
        %290 = vmatpush1.xpose.msra.mxu0 0.0
        %291 = vmatprep.subr.mxu0 0.0
        %292 = vmatpush1.xpose.msra.mxu0 0.0
        %293 = vmatprep.subr.mxu0 0.0
        %294 = vmatpush1.xpose.msra.mxu0 0.0
        %295 = vmatprep.subr.mxu0 0.0
        %296 = vmatpush1.xpose.msra.mxu0 0.0
        %297 = vmatprep.subr.mxu0 0.0
        %298 = vmatpush1.xpose.msra.mxu0 0.0
        %299 = vmatprep.subr.mxu0 0.0
        %300 = vmatpush1.xpose.msra.mxu0 0.0
        %301 = vmatprep.subr.mxu0 0.0
        %302 = vmatpush1.xpose.msra.mxu0 0.0
        %303 = vmatprep.subr.mxu0 0.0
        %304 = vmatpush1.xpose.msra.mxu0 0.0
        %305 = vmatprep.subr.mxu0 0.0
        %306 = vmatpush1.xpose.msra.mxu0 0.0
        %307 = vmatprep.subr.mxu0 0.0
        %308 = vmatpush1.xpose.msra.mxu0 0.0
        %309 = vmatprep.subr.mxu0 0.0
        %310 = vmatpush1.xpose.msra.mxu0 0.0
        %311 = vmatprep.mubr.f32.mxu0 0.0
        %312 = vmatmul.mubr.f32.gmra.mrb[0].mxu0 %v242
        %v313 = vpop.f32.mrb[0].mxu0
        %v314 = vadd.f32 0.0, %v313
        %v315 = vpop.f32.mrb[0].mxu0
        %316 = vdwg.mxu0
        %vm317 = vcmask 64512
        %318 = vst.msk [vmem:[%s237] sm:$0xff] %vm317, %v314
        %s319 = sand.u32 %s120, 1
        %s320 = scalar_lea.sflag [#allocation4], %s319
        %s321 = sand.u32 %s120, 1
        %s322 = smul.addr %s321, 8
        %s323 = scalar_lea.vmem [#allocation7], %s322
        // Predicated region
        $region37: #{tpu_custom_call.1} parent=27 // pred_check
          %p324 = pneg %p130
        $region38: #{tpu_custom_call.1} parent=27 // pred_check_branch
          %326 = sbr.rel (%p324) target = $region40
        $region39: #{tpu_custom_call.1} parent=27 // pred_region
          %s328 = ssub.s32 128, 128
          %329 = vsyncadd %s320, %s328
          %s330 = sadd.s32 %s30, %s29
          %s331 = sadd.s32 %s330, %s28
          %s332 = smul.addr %s331, 128
          %s333 = scalar_lea.hbm %s2, %s332
          %s335 = sshll.u32 %s323, 4
          %s336 = int_to_ptr.vmem [resolvable:$true] %s335
          %338 = dma.vmem_to_hbm [thread:$0]  %s336, 128, %s333, %s320
        $region40: #{tpu_custom_call.1} parent=27 // pred_fallthru
          _
      $region28: #{tpu_custom_call.1} parent=5 // pred_fallthru
        _
      %p339 = scmp.le.s32.totalorder 2, %s17
      // Predicated region
      $region41: #{tpu_custom_call.1} parent=5 // pred_check
        %p340 = pneg %p339
      $region42: #{tpu_custom_call.1} parent=5 // pred_check_branch
        %342 = sbr.rel (%p340) target = $region44
      $region43: #{tpu_custom_call.1} parent=5 // pred_region
        %s343 = ssub.s32 %s17, 2
        // Predicated region
        $region45: #{tpu_custom_call.1} parent=43 // pred_check
          %p344 = pneg %p136
        $region46: #{tpu_custom_call.1} parent=43 // pred_check_branch
          %346 = sbr.rel (%p344) target = $region48
        $region47: #{tpu_custom_call.1} parent=43 // pred_region
          %s347 = sand.u32 %s121, 1
          %s348 = scalar_lea.sflag [#allocation4], %s347
          %s349 = sand.u32 %s121, 1
          %s350 = smul.addr %s349, 8
          %s351 = scalar_lea.vmem [#allocation7], %s350
          %352 = dma.done %s348, 128
        $region48: #{tpu_custom_call.1} parent=43 // pred_fallthru
          _
      $region44: #{tpu_custom_call.1} parent=5 // pred_fallthru
        _
    $region6: #{tpu_custom_call.1} parent=1 // loop_footer
      %s21 = sadd.s32 1, %s17
    $region7: #{tpu_custom_call.1} parent=1 // loop_footer_branch
      %16 = sbr.rel target = $region3
    $region8: #{tpu_custom_call.1} parent=1 // loop_exit
      _
    %353 = vsyncpa [#allocation3], 1
    %s354 = scalar_lea.sflag [#allocation3], 1
    %355 = vsyncpa %s354, 1
    %356 = vsyncpa [#allocation6], 1
    %s357 = scalar_lea.sflag [#allocation6], 1
    %358 = vsyncpa %s357, 1
    %359 = vsyncpa [#allocation4], 1
    %s360 = scalar_lea.sflag [#allocation4], 1
    %361 = vsyncpa %s360, 1

</llo_original>
